<compile_context>
chip_gen: v6e
topology: v6e:2x2x1
jax: 0.10.0
libtpu: 0.0.40
codegen_flags: <defaults>
</compile_context>

<pallas_src>
import functools

import jax
import jax.numpy as jnp
from jax.experimental import pallas as pl
from jax.experimental.pallas import tpu as pltpu

# dot_general dimension numbers for "A @ B.T" (PyTorch Linear weight layout),
# same pattern as the stock Pallas flash-attention kernels.
_TRANS_B = (((1,), (1,)), ((), ()))


def _se_kernel(x_ref, w1_ref, w2_ref, o_ref, *, inv_hw):
    """Fused SE layer for one batch tile.

    x_ref : (Bt, C, HW)  activations, HW on the lane axis
    w1_ref: (Ch, C)      fc[0].weight  (PyTorch layout, Linear(C, Ch), no bias)
    w2_ref: (C, Ch)      fc[2].weight  (PyTorch layout, Linear(Ch, C), no bias)
    o_ref : (Bt, C, HW)
    """
    # --- squeeze: global average pool over the lane (HW) axis -> (Bt, C) ------
    pooled = jnp.sum(x_ref[...].astype(jnp.float32), axis=2) * inv_hw

    # --- excite: batched over the whole tile (one matmul pair per block) ------
    w1 = w1_ref[...].astype(jnp.float32)                            # (Ch, C)
    w2 = w2_ref[...].astype(jnp.float32)                            # (C, Ch)
    h = jax.lax.dot_general(pooled, w1, _TRANS_B,
                            preferred_element_type=jnp.float32)     # (Bt, Ch)
    h = jnp.maximum(h, 0.0)
    z = jax.lax.dot_general(h, w2, _TRANS_B,
                            preferred_element_type=jnp.float32)     # (Bt, C)
    s = jax.nn.sigmoid(z)                                           # (Bt, C), EUP

    # --- rescale: re-read x (no long live range), broadcast gate over HW ------
    o_ref[...] = (x_ref[...].astype(jnp.float32) * s[:, :, None]).astype(o_ref.dtype)


def _pick_batch_tile(batch, bytes_per_elem):
    """Batch-tile size: big blocks, bounded VMEM, >=2 steps once non-trivial."""
    budget = 3 << 20                              # x-block bytes; 4x this double-buffered
    bt = max(1, min(batch, budget // max(bytes_per_elem, 1)))
    # Give megacore (v7x) at least 2 "parallel" steps once the problem is big
    # enough to matter; tiny problems stay a single block (one invocation).
    if bt == batch and batch > 1 and batch * bytes_per_elem > (2 << 20):
        bt = -(-batch // 2)                       # ceil(batch / 2)
    return int(bt)


def se_layer(x, w1, w2):
    """x: (B, C, H, W); w1: (C//r, C); w2: (C, C//r). Returns (B, C, H, W)."""
    B, C, H, W = x.shape
    HW = H * W
    Ch = w1.shape[0]
    x3 = x.reshape(B, C, HW)                      # free view for contiguous NCHW
    itemsize = jnp.dtype(x.dtype).itemsize

    bt = _pick_batch_tile(B, C * HW * itemsize)
    grid = (pl.cdiv(B, bt),)                      # padded rows (if any) are
                                                  # per-row independent + discarded

    kernel = functools.partial(_se_kernel, inv_hw=1.0 / HW)

    cost = pl.CostEstimate(
        flops=2 * B * C * HW + 4 * B * C * max(Ch, 1),
        transcendentals=B * C,
        bytes_accessed=2 * B * C * HW * itemsize
        + w1.size * jnp.dtype(w1.dtype).itemsize
        + w2.size * jnp.dtype(w2.dtype).itemsize,
    )

    out = pl.pallas_call(
        kernel,
        out_shape=jax.ShapeDtypeStruct((B, C, HW), x.dtype),
        grid=grid,
        in_specs=[
            pl.BlockSpec((bt, C, HW), lambda b: (b, 0, 0)),   # batch tile
            pl.BlockSpec(w1.shape, lambda b: (0, 0)),          # small, resident
            pl.BlockSpec(w2.shape, lambda b: (0, 0)),
        ],
        out_specs=pl.BlockSpec((bt, C, HW), lambda b: (b, 0, 0)),
        compiler_params=pltpu.CompilerParams(
            dimension_semantics=("parallel",),     # v7x: shard batch over 2 TCs
            vmem_limit_bytes=32 * 1024 * 1024,     # lift v5e's 16 MiB default
        ),
        cost_estimate=cost,
    )(x3, w1, w2)

    return out.reshape(B, C, H, W)


def se_layer_ref(x, w1, w2):
    """Pure-JAX reference mirroring the PyTorch module."""
    pooled = jnp.mean(x, axis=(2, 3))                          # (B, C)
    h = jnp.maximum(pooled @ w1.T, 0.0)                        # (B, Ch)
    s = jax.nn.sigmoid(h @ w2.T)                               # (B, C)
    return x * s[:, :, None, None]


if __name__ == "__main__":
    # reduction=16 needs channel >= 16, so use channel=32 (hidden = 2).
    B, C, H, W = 2, 32, 16, 16
    reduction = 16
    Ch = C // reduction

    key = jax.random.PRNGKey(0)
    kx, k1, k2 = jax.random.split(key, 3)
    x = jax.random.normal(kx, (B, C, H, W), jnp.float32)
    w1 = jax.random.normal(k1, (Ch, C), jnp.float32) * (1.0 / C ** 0.5)
    w2 = jax.random.normal(k2, (C, Ch), jnp.float32) * (1.0 / max(Ch, 1) ** 0.5)

    out = jax.jit(se_layer)(x, w1, w2)
    out = jax.block_until_ready(out)

    ref = se_layer_ref(x, w1, w2)
    assert out.shape == (B, C, H, W), out.shape
    assert jnp.all(jnp.isfinite(out))
    assert jnp.max(jnp.abs(out - ref)) < 1e-5, float(jnp.max(jnp.abs(out - ref)))
    print("KERNEL_OK")
</pallas_src>

<mosaic_0001>
module attributes {stable_mosaic.version = 11 : i64} {
  func.func @_se_kernel(%arg0: i32, %arg1: memref<2x32x256xf32, #tpu.memory_space<vmem>>, %arg2: memref<2x32xf32, #tpu.memory_space<vmem>>, %arg3: memref<32x2xf32, #tpu.memory_space<vmem>>, %arg4: memref<2x32x256xf32, #tpu.memory_space<vmem>>) attributes {dimension_semantics = [#tpu.dimension_semantics<parallel>], iteration_bounds = array<i64: 1>, scalar_prefetch = 0 : i64, scratch_operands = 0 : i64, tpu.core_type = #tpu.core_type<tc>, window_params = [{transform_indices = @transform_0, window_bounds = array<i64: 2, 32, 256>}, {pipeline_mode = #tpu.pipeline_mode<synchronous>, transform_indices = @transform_1, window_bounds = array<i64: 2, 32>}, {pipeline_mode = #tpu.pipeline_mode<synchronous>, transform_indices = @transform_2, window_bounds = array<i64: 32, 2>}, {transform_indices = @transform_3, window_bounds = array<i64: 2, 32, 256>}]} {
    %c0 = arith.constant 0 : index
    %c0_0 = arith.constant 0 : index
    %c0_1 = arith.constant 0 : index
    %0 = vector.load %arg1[%c0, %c0_0, %c0_1] : memref<2x32x256xf32, #tpu.memory_space<vmem>>, vector<2x32x256xf32>
    %cst = arith.constant dense<0.000000e+00> : vector<2x32xf32>
    %1 = vector.multi_reduction <add>, %0, %cst [2] : vector<2x32x256xf32> to vector<2x32xf32>
    %cst_2 = arith.constant 3.906250e-03 : f32
    %2 = vector.broadcast %cst_2 : f32 to vector<2x32xf32>
    %3 = arith.mulf %1, %2 : vector<2x32xf32>
    %c0_3 = arith.constant 0 : index
    %c0_4 = arith.constant 0 : index
    %4 = vector.load %arg2[%c0_3, %c0_4] : memref<2x32xf32, #tpu.memory_space<vmem>>, vector<2x32xf32>
    %c0_5 = arith.constant 0 : index
    %c0_6 = arith.constant 0 : index
    %5 = vector.load %arg3[%c0_5, %c0_6] : memref<32x2xf32, #tpu.memory_space<vmem>>, vector<32x2xf32>
    %cst_7 = arith.constant dense<0.000000e+00> : vector<2x2xf32>
    %6 = tpu.matmul %3, %4, %cst_7 {dimension_numbers = #tpu.dot_dimension_numbers<[1], [1], [0], [0], [0, 0, 1, 0], [], []>} : vector<2x32xf32>, vector<2x32xf32>, vector<2x2xf32> -> vector<2x2xf32>
    %cst_8 = arith.constant 0.000000e+00 : f32
    %7 = vector.broadcast %cst_8 : f32 to vector<2x2xf32>
    %8 = arith.maximumf %6, %7 : vector<2x2xf32>
    %cst_9 = arith.constant dense<0.000000e+00> : vector<2x32xf32>
    %9 = tpu.matmul %8, %5, %cst_9 {dimension_numbers = #tpu.dot_dimension_numbers<[1], [1], [0], [0], [0, 0, 1, 0], [], []>} : vector<2x2xf32>, vector<32x2xf32>, vector<2x32xf32> -> vector<2x32xf32>
    %10 = arith.negf %9 : vector<2x32xf32>
    %11 = math.exp %10 : vector<2x32xf32>
    %cst_10 = arith.constant 1.000000e+00 : f32
    %12 = vector.broadcast %cst_10 : f32 to vector<2x32xf32>
    %13 = arith.addf %12, %11 : vector<2x32xf32>
    %14 = arith.divf %12, %13 : vector<2x32xf32>
    %c0_11 = arith.constant 0 : index
    %c0_12 = arith.constant 0 : index
    %c0_13 = arith.constant 0 : index
    %15 = vector.load %arg1[%c0_11, %c0_12, %c0_13] : memref<2x32x256xf32, #tpu.memory_space<vmem>>, vector<2x32x256xf32>
    %16 = vector.shape_cast %14 : vector<2x32xf32> to vector<2x32x1xf32>
    %17 = vector.broadcast %16 : vector<2x32x1xf32> to vector<2x32x256xf32>
    %18 = arith.mulf %15, %17 : vector<2x32x256xf32>
    %c0_14 = arith.constant 0 : index
    %c0_15 = arith.constant 0 : index
    %c0_16 = arith.constant 0 : index
    %19 = vector.load %arg4[%c0_14, %c0_15, %c0_16] : memref<2x32x256xf32, #tpu.memory_space<vmem>>, vector<2x32x256xf32>
    tpu.vector_store %arg4[%c0_14, %c0_15, %c0_16], %18 {strides = array<i32>} : memref<2x32x256xf32, #tpu.memory_space<vmem>>, vector<2x32x256xf32>,
    return
  }
  func.func @transform_0(%arg0: i32) -> (i32, i32, i32) {
    %c0_i32 = arith.constant 0 : i32
    %c0_i32_0 = arith.constant 0 : i32
    %c0_i32_1 = arith.constant 0 : i32
    return %arg0, %c0_i32, %c0_i32_0 : i32, i32, i32
  }
  func.func @transform_1(%arg0: i32) -> (i32, i32) {
    %c0_i32 = arith.constant 0 : i32
    %c0_i32_0 = arith.constant 0 : i32
    %c0_i32_1 = arith.constant 0 : i32
    return %c0_i32, %c0_i32_0 : i32, i32
  }
  func.func @transform_2(%arg0: i32) -> (i32, i32) {
    %c0_i32 = arith.constant 0 : i32
    %c0_i32_0 = arith.constant 0 : i32
    %c0_i32_1 = arith.constant 0 : i32
    return %c0_i32, %c0_i32_0 : i32, i32
  }
  func.func @transform_3(%arg0: i32) -> (i32, i32, i32) {
    %c0_i32 = arith.constant 0 : i32
    %c0_i32_0 = arith.constant 0 : i32
    %c0_i32_1 = arith.constant 0 : i32
    return %arg0, %c0_i32, %c0_i32_0 : i32, i32, i32
  }
}

</mosaic_0001>

<llo_original>
// kernel: se_layer.1
$region0: #{se_layer.1}
  #allocation0 [shape = 'u32[]', space=smem, size = 0x4, offset = 0x4, fixed_abs, tag = 'smem constant byte address 0x4 - core index']
  #allocation1 [shape = 'u32[144,128]{1,0:T(1,128)}', space=vmem, size = 0x12000, scoped, tag = 'internal scratch']
  %s0 = inlined_call_operand.vmem [shape: f32[2,32,256], index: 0, kind: input, shape index: {}]
  %s1 = inlined_call_operand.vmem [shape: f32[2,32], index: 1, kind: input, shape index: {}]
  %s2 = inlined_call_operand.vmem [shape: f32[32,2], index: 2, kind: input, shape index: {}]
  %s3 = inlined_call_operand.vmem [shape: f32[2,32,256], index: 3, kind: output, shape index: {}]
  %s4 = sld [smem:[#allocation0]]
  $region22: #{se_layer.1} parent=0
    _
  %s6 = ssub.s32 1, %s4
  %s7 = scalar_select 0, %s6, %s4
  // Predicated region
  $region2: #{se_layer.1} parent=0 // pred_check
    _
  $region3: #{se_layer.1} parent=0 // pred_check_branch
    %9 = sbr.rel (0) target = $region5
  $region4: #{se_layer.1} parent=0 // pred_region
    _
  $region5: #{se_layer.1} parent=0 // pred_fallthru
    _
  // Predicated region
  $region6: #{se_layer.1} parent=0 // pred_check
    _
  $region7: #{se_layer.1} parent=0 // pred_check_branch
    %11 = sbr.rel (0) target = $region9
  $region8: #{se_layer.1} parent=0 // pred_region
    _
  $region9: #{se_layer.1} parent=0 // pred_fallthru
    _
  // Predicated region
  $region10: #{se_layer.1} parent=0 // pred_check
    _
  $region11: #{se_layer.1} parent=0 // pred_check_branch
    %13 = sbr.rel (0) target = $region13
  $region12: #{se_layer.1} parent=0 // pred_region
    _
  $region13: #{se_layer.1} parent=0 // pred_fallthru
    _
  %v14 = vld [vmem:[%s0] sm:$0xff]
  %v15 = vld [vmem:[%s0 + $0x8] sm:$0xff]
  %v16 = vld [vmem:[%s0 + $0x10] sm:$0xff]
  %v17 = vld [vmem:[%s0 + $0x18] sm:$0xff]
  %v18 = vld [vmem:[%s0 + $0x20] sm:$0xff]
  %v19 = vld [vmem:[%s0 + $0x28] sm:$0xff]
  %v20 = vld [vmem:[%s0 + $0x30] sm:$0xff]
  %v21 = vld [vmem:[%s0 + $0x38] sm:$0xff]
  %v22 = vld [vmem:[%s0 + $0x40] sm:$0xff]
  %v23 = vld [vmem:[%s0 + $0x48] sm:$0xff]
  %v24 = vld [vmem:[%s0 + $0x50] sm:$0xff]
  %v25 = vld [vmem:[%s0 + $0x58] sm:$0xff]
  %v26 = vld [vmem:[%s0 + $0x60] sm:$0xff]
  %v27 = vld [vmem:[%s0 + $0x68] sm:$0xff]
  %v28 = vld [vmem:[%s0 + $0x70] sm:$0xff]
  %v29 = vld [vmem:[%s0 + $0x78] sm:$0xff]
  %v30 = vadd.f32 %v14, %v15
  %31 = vadd.xlane.f32.xlu0 %v30
  %v32 = vpop.xlane.xlu0 %31
  %v33 = vadd.f32 %v16, %v17
  %34 = vadd.xlane.f32.xlu0 %v33
  %v35 = vpop.xlane.xlu0 %34
  %v36 = vadd.f32 %v18, %v19
  %37 = vadd.xlane.f32.xlu0 %v36
  %v38 = vpop.xlane.xlu0 %37
  %v39 = vadd.f32 %v20, %v21
  %40 = vadd.xlane.f32.xlu0 %v39
  %v41 = vpop.xlane.xlu0 %40
  %v42 = vadd.f32 %v22, %v23
  %43 = vadd.xlane.f32.xlu0 %v42
  %v44 = vpop.xlane.xlu0 %43
  %v45 = vadd.f32 %v24, %v25
  %46 = vadd.xlane.f32.xlu0 %v45
  %v47 = vpop.xlane.xlu0 %46
  %v48 = vadd.f32 %v26, %v27
  %49 = vadd.xlane.f32.xlu0 %v48
  %v50 = vpop.xlane.xlu0 %49
  %v51 = vadd.f32 %v28, %v29
  %52 = vadd.xlane.f32.xlu0 %v51
  %v53 = vpop.xlane.xlu0 %52
  %v54 = vmul.f32 %v32, 0.00390625
  %v55 = vmul.f32 %v35, 0.00390625
  %v56 = vmul.f32 %v38, 0.00390625
  %v57 = vmul.f32 %v41, 0.00390625
  %v58 = vmul.f32 %v44, 0.00390625
  %v59 = vmul.f32 %v47, 0.00390625
  %v60 = vmul.f32 %v50, 0.00390625
  %v61 = vmul.f32 %v53, 0.00390625
  %v62 = vld [vmem:[%s1] sm:$0x3]
  %v63 = vld [vmem:[%s2] sm:$0xff]
  %v64 = vld [vmem:[%s2 + $0x8] sm:$0xff]
  %v65 = vld [vmem:[%s2 + $0x10] sm:$0xff]
  %v66 = vld [vmem:[%s2 + $0x18] sm:$0xff]
  %v75 = vlaneseq
  %v76 = vand.u32 %v75, 127
  %v77 = vlaneseq
  %v78 = vshrl.u32 %v77, 7
  %v79 = vsub.s32 %v76, %v78
  %v80 = vrot.slane %v54, %v79
  %v81 = vadd.s32 %v76, 4294967288
  %v82 = vlaneseq
  %v83 = vshrl.u32 %v82, 7
  %v84 = vsub.s32 %v81, %v83
  %v85 = vrot.slane %v55, %v84
  %vm86 = vcmask 130112
  %v87 = vsel %vm86, %v85, %v80
  %v88 = vadd.s32 %v76, 4294967280
  %v89 = vlaneseq
  %v90 = vshrl.u32 %v89, 7
  %v91 = vsub.s32 %v88, %v90
  %v92 = vrot.slane %v56, %v91
  %vm93 = vcmask 195712
  %v94 = vsel %vm93, %v92, %v87
  %v95 = vadd.s32 %v76, 4294967272
  %v96 = vlaneseq
  %v97 = vshrl.u32 %v96, 7
  %v98 = vsub.s32 %v95, %v97
  %v99 = vrot.slane %v57, %v98
  %vm100 = vcmask 261312
  %v101 = vsel %vm100, %v99, %v94
  %v102 = vlaneseq
  %v103 = vshrl.u32 %v102, 7
  %v104 = vsub.s32 %v76, %v103
  %v105 = vrot.slane %v58, %v104
  %v106 = vlaneseq
  %v107 = vshrl.u32 %v106, 7
  %v108 = vsub.s32 %v81, %v107
  %v109 = vrot.slane %v59, %v108
  %v110 = vsel %vm86, %v109, %v105
  %v111 = vlaneseq
  %v112 = vshrl.u32 %v111, 7
  %v113 = vsub.s32 %v88, %v112
  %v114 = vrot.slane %v60, %v113
  %v115 = vsel %vm93, %v114, %v110
  %v116 = vlaneseq
  %v117 = vshrl.u32 %v116, 7
  %v118 = vsub.s32 %v95, %v117
  %v119 = vrot.slane %v61, %v118
  %v120 = vsel %vm100, %v119, %v115
  %vm121 = vcmask 1041409
  %v122 = vsel %vm121, %v120, %v101
  %vm123 = vcmask 261120
  %v124 = vsel %vm123, %v122, 0
  %v127 = vsel %vm123, %v62, 0
  %129 = vmatprep.subr.mxu0 0.0
  %130 = vmatpush1.xpose.msra.mxu0 0.0
  %131 = vmatprep.subr.mxu0 0.0
  %132 = vmatpush1.xpose.msra.mxu0 0.0
  %133 = vmatprep.subr.mxu0 0.0
  %134 = vmatpush1.xpose.msra.mxu0 0.0
  %135 = vmatprep.subr.mxu0 0.0
  %136 = vmatpush1.xpose.msra.mxu0 0.0
  %137 = vmatprep.subr.mxu0 0.0
  %138 = vmatpush1.xpose.msra.mxu0 0.0
  %139 = vmatprep.subr.mxu0 0.0
  %140 = vmatpush1.xpose.msra.mxu0 0.0
  %141 = vmatprep.subr.mxu0 0.0
  %142 = vmatpush1.xpose.msra.mxu0 0.0
  %143 = vmatprep.subr.mxu0 0.0
  %144 = vmatpush1.xpose.msra.mxu0 0.0
  %145 = vmatprep.subr.mxu0 0.0
  %146 = vmatpush1.xpose.msra.mxu0 0.0
  %147 = vmatprep.subr.mxu0 0.0
  %148 = vmatpush1.xpose.msra.mxu0 0.0
  %149 = vmatprep.subr.mxu0 0.0
  %150 = vmatpush1.xpose.msra.mxu0 0.0
  %151 = vmatprep.subr.mxu0 0.0
  %152 = vmatpush1.xpose.msra.mxu0 0.0
  %153 = vmatprep.subr.mxu0 0.0
  %154 = vmatpush1.xpose.msra.mxu0 0.0
  %155 = vmatprep.subr.mxu0 0.0
  %156 = vmatpush1.xpose.msra.mxu0 0.0
  %157 = vmatprep.subr.mxu0 0.0
  %158 = vmatpush1.xpose.msra.mxu0 0.0
  %159 = vmatprep.subr.mxu0 0.0
  %160 = vmatpush1.xpose.msra.mxu0 %v127
  %161 = vmatprep.subr.mxu0 0.0
  %162 = vmatpush2.xpose.msra.mxu0 0.0
  %163 = vmatprep.subr.mxu0 0.0
  %164 = vmatpush2.xpose.msra.mxu0 0.0
  %165 = vmatprep.subr.mxu0 0.0
  %166 = vmatpush2.xpose.msra.mxu0 0.0
  %167 = vmatprep.subr.mxu0 0.0
  %168 = vmatpush2.xpose.msra.mxu0 0.0
  %169 = vmatprep.subr.mxu0 0.0
  %170 = vmatpush2.xpose.msra.mxu0 0.0
  %171 = vmatprep.subr.mxu0 0.0
  %172 = vmatpush2.xpose.msra.mxu0 0.0
  %173 = vmatprep.subr.mxu0 0.0
  %174 = vmatpush2.xpose.msra.mxu0 0.0
  %175 = vmatprep.subr.mxu0 0.0
  %176 = vmatpush2.xpose.msra.mxu0 0.0
  %177 = vmatprep.subr.mxu0 0.0
  %178 = vmatpush2.xpose.msra.mxu0 0.0
  %179 = vmatprep.subr.mxu0 0.0
  %180 = vmatpush2.xpose.msra.mxu0 0.0
  %181 = vmatprep.subr.mxu0 0.0
  %182 = vmatpush2.xpose.msra.mxu0 0.0
  %183 = vmatprep.subr.mxu0 0.0
  %184 = vmatpush2.xpose.msra.mxu0 0.0
  %185 = vmatprep.subr.mxu0 0.0
  %186 = vmatpush2.xpose.msra.mxu0 0.0
  %187 = vmatprep.subr.mxu0 0.0
  %188 = vmatpush2.xpose.msra.mxu0 0.0
  %189 = vmatprep.subr.mxu0 0.0
  %190 = vmatpush2.xpose.msra.mxu0 0.0
  %191 = vmatprep.subr.mxu0 0.0
  %192 = vmatpush2.xpose.msra.mxu0 0.0
  %193 = vmatprep.mubr.f32.mxu0 0.0
  %194 = vmatmul.mubr.f32.gmra.mxu0 %v124
  %v195 = vpop.f32.mrf.mxu0
  %v196 = vadd.f32 0.0, %v195
  %v197 = vpop.f32.mrf.mxu0
  %198 = vdwg.mxu0
  %v199 = vmax.f32 %v196, 0.0
  %vm200 = vcmask 15360
  %v202 = vsel %vm200, %v199, 0
  %v205 = vsel %vm200, %v63, 0
  %v208 = vsel %vm200, %v64, 0
  %v211 = vsel %vm200, %v65, 0
  %v214 = vsel %vm200, %v66, 0
  %216 = vmatprep.subr.mxu0 0.0
  %217 = vmatpush1.xpose.msra.mxu0 0.0
  %218 = vmatprep.subr.mxu0 0.0
  %219 = vmatpush1.xpose.msra.mxu0 0.0
  %220 = vmatprep.subr.mxu0 0.0
  %221 = vmatpush1.xpose.msra.mxu0 0.0
  %222 = vmatprep.subr.mxu0 0.0
  %223 = vmatpush1.xpose.msra.mxu0 0.0
  %224 = vmatprep.subr.mxu0 0.0
  %225 = vmatpush1.xpose.msra.mxu0 0.0
  %226 = vmatprep.subr.mxu0 0.0
  %227 = vmatpush1.xpose.msra.mxu0 0.0
  %228 = vmatprep.subr.mxu0 0.0
  %229 = vmatpush1.xpose.msra.mxu0 0.0
  %230 = vmatprep.subr.mxu0 0.0
  %231 = vmatpush1.xpose.msra.mxu0 0.0
  %232 = vmatprep.subr.mxu0 0.0
  %233 = vmatpush1.xpose.msra.mxu0 0.0
  %234 = vmatprep.subr.mxu0 0.0
  %235 = vmatpush1.xpose.msra.mxu0 0.0
  %236 = vmatprep.subr.mxu0 0.0
  %237 = vmatpush1.xpose.msra.mxu0 0.0
  %238 = vmatprep.subr.mxu0 0.0
  %239 = vmatpush1.xpose.msra.mxu0 0.0
  %240 = vmatprep.subr.mxu0 0.0
  %241 = vmatpush1.xpose.msra.mxu0 %v214
  %242 = vmatprep.subr.mxu0 0.0
  %243 = vmatpush1.xpose.msra.mxu0 %v211
  %244 = vmatprep.subr.mxu0 0.0
  %245 = vmatpush1.xpose.msra.mxu0 %v208
  %246 = vmatprep.subr.mxu0 0.0
  %247 = vmatpush1.xpose.msra.mxu0 %v205
  %248 = vmatprep.subr.mxu0 0.0
  %249 = vmatpush2.xpose.msra.mxu0 0.0
  %250 = vmatprep.subr.mxu0 0.0
  %251 = vmatpush2.xpose.msra.mxu0 0.0
  %252 = vmatprep.subr.mxu0 0.0
  %253 = vmatpush2.xpose.msra.mxu0 0.0
  %254 = vmatprep.subr.mxu0 0.0
  %255 = vmatpush2.xpose.msra.mxu0 0.0
  %256 = vmatprep.subr.mxu0 0.0
  %257 = vmatpush2.xpose.msra.mxu0 0.0
  %258 = vmatprep.subr.mxu0 0.0
  %259 = vmatpush2.xpose.msra.mxu0 0.0
  %260 = vmatprep.subr.mxu0 0.0
  %261 = vmatpush2.xpose.msra.mxu0 0.0
  %262 = vmatprep.subr.mxu0 0.0
  %263 = vmatpush2.xpose.msra.mxu0 0.0
  %264 = vmatprep.subr.mxu0 0.0
  %265 = vmatpush2.xpose.msra.mxu0 0.0
  %266 = vmatprep.subr.mxu0 0.0
  %267 = vmatpush2.xpose.msra.mxu0 0.0
  %268 = vmatprep.subr.mxu0 0.0
  %269 = vmatpush2.xpose.msra.mxu0 0.0
  %270 = vmatprep.subr.mxu0 0.0
  %271 = vmatpush2.xpose.msra.mxu0 0.0
  %272 = vmatprep.subr.mxu0 0.0
  %273 = vmatpush2.xpose.msra.mxu0 0.0
  %274 = vmatprep.subr.mxu0 0.0
  %275 = vmatpush2.xpose.msra.mxu0 0.0
  %276 = vmatprep.subr.mxu0 0.0
  %277 = vmatpush2.xpose.msra.mxu0 0.0
  %278 = vmatprep.subr.mxu0 0.0
  %279 = vmatpush2.xpose.msra.mxu0 0.0
  %280 = vmatprep.mubr.f32.mxu0 0.0
  %281 = vmatmul.mubr.f32.gmra.mxu0 %v202
  %v282 = vpop.f32.mrf.mxu0
  %v283 = vadd.f32 0.0, %v282
  %v284 = vpop.f32.mrf.mxu0
  %285 = vdwg.mxu0
  %v286 = vxor.u32 %v283, 2147483648
  %v287 = vmul.f32 %v286, 1.442695
  %v288 = vpow.pop %v287
  %v289 = vadd.f32 %v288, 1.0
  %v290 = vrcp.pop %v289
  %v291 = vmul.f32 1.0, %v290
  %v292 = vlaneseq
  %v293 = vshrl.u32 %v292, 7
  %v294 = vsub.s32 0, %v293
  %v295 = vrot.slane %v291, %v294
  %297 = vbcast.lane.b32.xlu0 %v295, 256
  %v298 = vpop.permute.xlu0 %297
  %s300 = sor.u32 256, 8
  %301 = vbcast.lane.b32.xlu0 %v295, %s300
  %v302 = vpop.permute.xlu0 %301
  %s304 = sor.u32 256, 16
  %305 = vbcast.lane.b32.xlu0 %v295, %s304
  %v306 = vpop.permute.xlu0 %305
  %s308 = sor.u32 256, 24
  %309 = vbcast.lane.b32.xlu0 %v295, %s308
  %v310 = vpop.permute.xlu0 %309
  %v311 = vlaneseq
  %v312 = vshrl.u32 %v311, 7
  %v313 = vsub.s32 1, %v312
  %v314 = vrot.slane %v291, %v313
  %316 = vbcast.lane.b32.xlu0 %v314, 256
  %v317 = vpop.permute.xlu0 %316
  %s319 = sor.u32 256, 8
  %320 = vbcast.lane.b32.xlu0 %v314, %s319
  %v321 = vpop.permute.xlu0 %320
  %s323 = sor.u32 256, 16
  %324 = vbcast.lane.b32.xlu0 %v314, %s323
  %v325 = vpop.permute.xlu0 %324
  %s327 = sor.u32 256, 24
  %328 = vbcast.lane.b32.xlu0 %v314, %s327
  %v329 = vpop.permute.xlu0 %328
  %v330 = vmul.f32 %v14, %v298
  %v331 = vmul.f32 %v15, %v298
  %v332 = vmul.f32 %v16, %v302
  %v333 = vmul.f32 %v17, %v302
  %v334 = vmul.f32 %v18, %v306
  %v335 = vmul.f32 %v19, %v306
  %v336 = vmul.f32 %v20, %v310
  %v337 = vmul.f32 %v21, %v310
  %v338 = vmul.f32 %v22, %v317
  %v339 = vmul.f32 %v23, %v317
  %v340 = vmul.f32 %v24, %v321
  %v341 = vmul.f32 %v25, %v321
  %v342 = vmul.f32 %v26, %v325
  %v343 = vmul.f32 %v27, %v325
  %v344 = vmul.f32 %v28, %v329
  %v345 = vmul.f32 %v29, %v329
  %346 = vst [vmem:[%s3] sm:$0xff] %v330
  %347 = vst [vmem:[%s3 + $0x8] sm:$0xff] %v331
  %348 = vst [vmem:[%s3 + $0x10] sm:$0xff] %v332
  %349 = vst [vmem:[%s3 + $0x18] sm:$0xff] %v333
  %350 = vst [vmem:[%s3 + $0x20] sm:$0xff] %v334
  %351 = vst [vmem:[%s3 + $0x28] sm:$0xff] %v335
  %352 = vst [vmem:[%s3 + $0x30] sm:$0xff] %v336
  %353 = vst [vmem:[%s3 + $0x38] sm:$0xff] %v337
  %354 = vst [vmem:[%s3 + $0x40] sm:$0xff] %v338
  %355 = vst [vmem:[%s3 + $0x48] sm:$0xff] %v339
  %356 = vst [vmem:[%s3 + $0x50] sm:$0xff] %v340
  %357 = vst [vmem:[%s3 + $0x58] sm:$0xff] %v341
  %358 = vst [vmem:[%s3 + $0x60] sm:$0xff] %v342
  %359 = vst [vmem:[%s3 + $0x68] sm:$0xff] %v343
  %360 = vst [vmem:[%s3 + $0x70] sm:$0xff] %v344
  %361 = vst [vmem:[%s3 + $0x78] sm:$0xff] %v345
  // Predicated region
  $region14: #{se_layer.1} parent=0 // pred_check
    _
  $region15: #{se_layer.1} parent=0 // pred_check_branch
    %363 = sbr.rel (0) target = $region17
  $region16: #{se_layer.1} parent=0 // pred_region
    _
  $region17: #{se_layer.1} parent=0 // pred_fallthru
    _
  // Predicated region
  $region18: #{se_layer.1} parent=0 // pred_check
    _
  $region19: #{se_layer.1} parent=0 // pred_check_branch
    %365 = sbr.rel (0) target = $region21
  $region20: #{se_layer.1} parent=0 // pred_region
    _
  $region21: #{se_layer.1} parent=0 // pred_fallthru
    _

</llo_original>
